<compile_context>
chip_gen: v7x
topology: tpu7x:2x2x1
jax: 0.10.0
libtpu: 0.0.40
codegen_flags: <defaults>
</compile_context>

<pallas_src>
import jax
import jax.numpy as jnp
from jax.experimental import pallas as pl
from jax.experimental.pallas import tpu as pltpu


def _cdiv(a, b):
    return -(-a // b)


def _chip_profile():
    """(has_two_tensorcores, vmem_budget_bytes, target_block_bytes) for the
    current chip, with conservative fallbacks if detection fails."""
    kind = ""
    try:
        kind = jax.devices()[0].device_kind.lower()
    except Exception:
        pass
    is_v7 = "v7" in kind
    # 2 TensorCores per chip: v4 / v5p (megacore) and v7x; v5e / v6e have 1.
    two_cores = is_v7 or ("v4" in kind) or ("v5p" in kind) or kind.endswith("v5")
    vmem_budget = (64 << 20) if is_v7 else (128 << 20)
    target_block = (2 << 20) if is_v7 else (4 << 20)
    return two_cores, vmem_budget, target_block


def _choose_tiles(S, B, D, itemsize, target_block_bytes, num_seq_splits):
    """Pick (seq_tile, d_tile) so blocks are ~target size, stores stay
    lane-dense, and multi-TC chips get balanced work."""
    # Lane (dim) tiling: only when one full row exceeds the block budget AND
    # D splits cleanly into multiples of 128.
    d_tile = D
    if B * D * itemsize > target_block_bytes and D % 128 == 0 and D > 128:
        lane_groups = max(1, target_block_bytes // (B * 128 * itemsize))
        d_tile = int(min(D, lane_groups * 128))
    # TODO(synk): if B*D*itemsize still exceeds VMEM with an untileable D
    # (D not a multiple of 128), a batch (sublane) tiling axis would be needed.
    n_d = _cdiv(D, d_tile)

    # Seq tiling: biggest tile under the budget, rebalanced so grid steps are
    # roughly equal.  Only force a split when the chip has >1 TensorCore
    # (grid steps are a serial loop on 1-TC chips).
    row_bytes = max(1, B * d_tile * itemsize)
    seq_tile = max(1, min(S, target_block_bytes // row_bytes))
    if seq_tile >= S:
        if num_seq_splits > 1 and S > 1 and n_d < num_seq_splits:
            seq_tile = _cdiv(S, num_seq_splits)     # balanced (round UP)
        else:
            seq_tile = S
    else:
        seq_tile = _cdiv(S, _cdiv(S, seq_tile))     # rebalance
    return seq_tile, d_tile


def _add_pe_kernel(x_ref, pe_ref, o_ref):
    # x_ref: (seq_tile, B, d_tile), pe_ref: (seq_tile, 1, d_tile) f32.
    # Single f32 add (broadcast over batch sublanes), single full-width store.
    x = x_ref[...].astype(jnp.float32)
    o_ref[...] = (x + pe_ref[...]).astype(o_ref.dtype)


def positional_encoding_forward(x, dim, max_len=5000):
    """x: [seq_len, batch, dim] -> x + pe[:seq_len] (pe broadcast over batch)."""
    S, B, D = x.shape
    assert D == dim, "last axis of x must equal dim"
    assert S <= max_len, "seq_len must be <= max_len"
    itemsize = jnp.dtype(x.dtype).itemsize

    two_cores, vmem_budget, target_block = _chip_profile()
    seq_tile, d_tile = _choose_tiles(S, B, D, itemsize, target_block,
                                     2 if two_cores else 1)
    grid = (_cdiv(S, seq_tile), _cdiv(D, d_tile))

    # Host-precomputed table (same arithmetic as the PyTorch buffer); only the
    # first S rows are materialized / streamed.
    positions = jnp.arange(S, dtype=jnp.float32)[:, None]                      # [S, 1]
    denom = 10000.0 ** (jnp.arange(0, D, 2, dtype=jnp.float32) / float(dim))   # [ceil(D/2)]
    angles = positions / denom                                                 # [S, ceil(D/2)]
    pe = jnp.zeros((S, D), dtype=jnp.float32)
    pe = pe.at[:, 0::2].set(jnp.sin(angles))
    pe = pe.at[:, 1::2].set(jnp.cos(angles)[:, : D // 2])
    pe = pe.reshape(S, 1, D)

    # VMEM: double-buffered x in + out blocks, plus the (tiny) pe blocks.
    block_x = seq_tile * B * d_tile * itemsize
    block_pe = seq_tile * d_tile * 4
    vmem_need = 4 * block_x + 2 * block_pe + (2 << 20)
    vmem_limit = int(min(vmem_budget - (16 << 20), max(vmem_need, 32 << 20)))

    out = pl.pallas_call(
        _add_pe_kernel,
        out_shape=jax.ShapeDtypeStruct((S, B, D), x.dtype),
        grid=grid,
        in_specs=[
            pl.BlockSpec((seq_tile, B, d_tile), lambda i, j: (i, 0, j)),   # x
            pl.BlockSpec((seq_tile, 1, d_tile), lambda i, j: (i, 0, j)),   # pe
        ],
        out_specs=pl.BlockSpec((seq_tile, B, d_tile), lambda i, j: (i, 0, j)),
        compiler_params=pltpu.CompilerParams(
            dimension_semantics=("parallel", "parallel"),
            vmem_limit_bytes=vmem_limit,
        ),
        cost_estimate=pl.CostEstimate(
            flops=S * B * D,
            transcendentals=0,
            bytes_accessed=2 * S * B * D * itemsize + S * D * 4,
        ),
    )(x, pe)
    return out


def _reference(x, dim, max_len=5000):
    """Pure-JAX replica of the PyTorch module for verification."""
    S = x.shape[0]
    positions = jnp.arange(0, max_len, dtype=jnp.float32)[:, None]
    denominator = 10000.0 ** (jnp.arange(0, dim, 2, dtype=jnp.float32) / dim)
    pe = jnp.zeros((max_len, 1, dim), dtype=jnp.float32)
    pe = pe.at[:, 0, 0::2].set(jnp.sin(positions / denominator))
    pe = pe.at[:, 0, 1::2].set(jnp.cos(positions / denominator))
    return x + pe[:S].astype(x.dtype)


if __name__ == "__main__":
    key = jax.random.PRNGKey(0)
    seq_len, batch, dim = 8, 4, 32
    x = jax.random.normal(key, (seq_len, batch, dim), dtype=jnp.float32)

    out = positional_encoding_forward(x, dim, max_len=5000)
    out = jax.block_until_ready(out)

    ref = _reference(x, dim, max_len=5000)
    assert out.shape == x.shape and out.dtype == x.dtype
    assert jnp.allclose(out, ref, atol=1e-5, rtol=1e-5), "mismatch vs reference"

    print("KERNEL_OK")
</pallas_src>

<mosaic_0001>
module attributes {stable_mosaic.version = 11 : i64} {
  func.func @_add_pe_kernel(%arg0: i32, %arg1: i32, %arg2: memref<8x4x32xf32, #tpu.memory_space<vmem>>, %arg3: memref<8x1x32xf32, #tpu.memory_space<vmem>>, %arg4: memref<8x4x32xf32, #tpu.memory_space<vmem>>) attributes {dimension_semantics = [#tpu.dimension_semantics<parallel>, #tpu.dimension_semantics<parallel>], iteration_bounds = array<i64: 1, 1>, scalar_prefetch = 0 : i64, scratch_operands = 0 : i64, tpu.core_type = #tpu.core_type<tc>, window_params = [{transform_indices = @transform_0, window_bounds = array<i64: 8, 4, 32>}, {transform_indices = @transform_1, window_bounds = array<i64: 8, 1, 32>}, {transform_indices = @transform_2, window_bounds = array<i64: 8, 4, 32>}]} {
    %c0 = arith.constant 0 : index
    %c0_0 = arith.constant 0 : index
    %c0_1 = arith.constant 0 : index
    %0 = vector.load %arg2[%c0, %c0_0, %c0_1] : memref<8x4x32xf32, #tpu.memory_space<vmem>>, vector<8x4x32xf32>
    %c0_2 = arith.constant 0 : index
    %c0_3 = arith.constant 0 : index
    %c0_4 = arith.constant 0 : index
    %1 = vector.load %arg3[%c0_2, %c0_3, %c0_4] : memref<8x1x32xf32, #tpu.memory_space<vmem>>, vector<8x1x32xf32>
    %2 = vector.broadcast %1 : vector<8x1x32xf32> to vector<8x4x32xf32>
    %3 = arith.addf %0, %2 : vector<8x4x32xf32>
    %c0_5 = arith.constant 0 : index
    %c0_6 = arith.constant 0 : index
    %c0_7 = arith.constant 0 : index
    %4 = vector.load %arg4[%c0_5, %c0_6, %c0_7] : memref<8x4x32xf32, #tpu.memory_space<vmem>>, vector<8x4x32xf32>
    tpu.vector_store %arg4[%c0_5, %c0_6, %c0_7], %3 {strides = array<i32>} : memref<8x4x32xf32, #tpu.memory_space<vmem>>, vector<8x4x32xf32>,
    return
  }
  func.func @transform_0(%arg0: i32, %arg1: i32) -> (i32, i32, i32) {
    %c0_i32 = arith.constant 0 : i32
    %c0_i32_0 = arith.constant 0 : i32
    return %arg0, %c0_i32, %arg1 : i32, i32, i32
  }
  func.func @transform_1(%arg0: i32, %arg1: i32) -> (i32, i32, i32) {
    %c0_i32 = arith.constant 0 : i32
    %c0_i32_0 = arith.constant 0 : i32
    return %arg0, %c0_i32, %arg1 : i32, i32, i32
  }
  func.func @transform_2(%arg0: i32, %arg1: i32) -> (i32, i32, i32) {
    %c0_i32 = arith.constant 0 : i32
    %c0_i32_0 = arith.constant 0 : i32
    return %arg0, %c0_i32, %arg1 : i32, i32, i32
  }
}

</mosaic_0001>

<llo_original>
// kernel: tpu_custom_call.1
$region0: #{tpu_custom_call.1}
  #allocation0 [shape = 'u32[]', space=smem, size = 0x4, offset = 0x4, fixed_abs, tag = 'smem constant byte address 0x4 - core index']
  #allocation1 [shape = 'u32[144,128]{1,0:T(1,128)}', space=vmem, size = 0x12000, scoped, tag = 'internal scratch']
  %s0 = inlined_call_operand.hbm [shape: f32[8,4,32], index: 0, kind: input, shape index: {}]
  %s1 = inlined_call_operand.hbm [shape: f32[8,1,32], index: 1, kind: input, shape index: {}]
  %s2 = inlined_call_operand.hbm [shape: f32[8,4,32], index: 2, kind: output, shape index: {}]
  %s3 = sld [smem:[#allocation0]]
  $region26: #{tpu_custom_call.1} parent=0
    _
  %s5 = ssub.s32 1, %s3
  %s6 = scalar_select 0, %s5, %s3
  $region1: #{tpu_custom_call.1} parent=0
    #allocation2 [shape = 'u8[16384]{0}', space=vmem, size = 0x4000, scoped, tag = 'input window, operand 0, single buffered']
    #allocation3 [shape = 's32[1]{0}', space=sflag, size = 0x4, scoped, tag = 'scoped memory for tpu_custom_call.1']
    #allocation4 [shape = 's32[1]{0}', space=sflag, size = 0x4, scoped, tag = 'scoped memory for tpu_custom_call.1']
    #allocation5 [shape = 'u8[4096]{0}', space=vmem, size = 0x1000, scoped, tag = 'input window, operand 1, single buffered']
    #allocation6 [shape = 's32[1]{0}', space=sflag, size = 0x4, scoped, tag = 'scoped memory for tpu_custom_call.1']
    #allocation7 [shape = 'u8[16384]{0}', space=vmem, size = 0x4000, scoped, tag = 'output window, operand 0, single buffered']
    %7 = vsyncpa [#allocation3], 0
    %8 = vsyncpa [#allocation6], 0
    %9 = vsyncpa [#allocation4], 0
    // Predicated region
    $region2: #{tpu_custom_call.1} parent=1 // pred_check
      _
    $region3: #{tpu_custom_call.1} parent=1 // pred_check_branch
      %11 = sbr.rel (0) target = $region5
    $region4: #{tpu_custom_call.1} parent=1 // pred_region
      %s13 = ssub.s32 512, 512
      %14 = vsyncadd [#allocation3], %s13
      %s15 = sshll.u32 [#allocation2], 4
      %s16 = int_to_ptr.vmem [resolvable:$true] %s15
      %21 = dma.hbm_to_vmem [thread:$0]  %s0, 512, %s16, [#allocation3], 64, 64, 4
    $region5: #{tpu_custom_call.1} parent=1 // pred_fallthru
      _
    // Predicated region
    $region6: #{tpu_custom_call.1} parent=1 // pred_check
      _
    $region7: #{tpu_custom_call.1} parent=1 // pred_check_branch
      %23 = sbr.rel (0) target = $region9
    $region8: #{tpu_custom_call.1} parent=1 // pred_region
      %s25 = ssub.s32 128, 128
      %26 = vsyncadd [#allocation6], %s25
      %s27 = sshll.u32 [#allocation5], 4
      %s28 = int_to_ptr.vmem [resolvable:$true] %s27
      %33 = dma.hbm_to_vmem [thread:$0]  %s1, 128, %s28, [#allocation6], 16, 16, 1
    $region9: #{tpu_custom_call.1} parent=1 // pred_fallthru
      _
    // Predicated region
    $region10: #{tpu_custom_call.1} parent=1 // pred_check
      _
    $region11: #{tpu_custom_call.1} parent=1 // pred_check_branch
      %35 = sbr.rel (0) target = $region13
    $region12: #{tpu_custom_call.1} parent=1 // pred_region
      %36 = dma.done [#allocation3], 512
    $region13: #{tpu_custom_call.1} parent=1 // pred_fallthru
      _
    // Predicated region
    $region14: #{tpu_custom_call.1} parent=1 // pred_check
      _
    $region15: #{tpu_custom_call.1} parent=1 // pred_check_branch
      %38 = sbr.rel (0) target = $region17
    $region16: #{tpu_custom_call.1} parent=1 // pred_region
      %39 = dma.done [#allocation6], 128
    $region17: #{tpu_custom_call.1} parent=1 // pred_fallthru
      _
    %v40 = vld [vmem:[#allocation2] sm:$0xf]
    %v41 = vld [vmem:[#allocation2 + $0x4] sm:$0xf]
    %v42 = vld [vmem:[#allocation2 + $0x8] sm:$0xf]
    %v43 = vld [vmem:[#allocation2 + $0xc] sm:$0xf]
    %v44 = vld [vmem:[#allocation2 + $0x10] sm:$0xf]
    %v45 = vld [vmem:[#allocation2 + $0x14] sm:$0xf]
    %v46 = vld [vmem:[#allocation2 + $0x18] sm:$0xf]
    %v47 = vld [vmem:[#allocation2 + $0x1c] sm:$0xf]
    %v48 = vld [vmem:[#allocation5] sm:$0x1]
    %v49 = vld [vmem:[#allocation5 + $0x1] sm:$0x1]
    %v50 = vld [vmem:[#allocation5 + $0x2] sm:$0x1]
    %v51 = vld [vmem:[#allocation5 + $0x3] sm:$0x1]
    %v52 = vld [vmem:[#allocation5 + $0x4] sm:$0x1]
    %v53 = vld [vmem:[#allocation5 + $0x5] sm:$0x1]
    %v54 = vld [vmem:[#allocation5 + $0x6] sm:$0x1]
    %v55 = vld [vmem:[#allocation5 + $0x7] sm:$0x1]
    %v64 = vlaneseq
    %v65 = vshrl.u32 %v64, 7
    %v66 = vsub.s32 0, %v65
    %v67 = vrot.slane %v48, %v66
    %v68 = vlaneseq
    %v69 = vshrl.u32 %v68, 7
    %v70 = vsub.s32 0, %v69
    %v71 = vrot.slane %v49, %v70
    %v72 = vlaneseq
    %v73 = vshrl.u32 %v72, 7
    %v74 = vsub.s32 0, %v73
    %v75 = vrot.slane %v50, %v74
    %v76 = vlaneseq
    %v77 = vshrl.u32 %v76, 7
    %v78 = vsub.s32 0, %v77
    %v79 = vrot.slane %v51, %v78
    %v80 = vlaneseq
    %v81 = vshrl.u32 %v80, 7
    %v82 = vsub.s32 0, %v81
    %v83 = vrot.slane %v52, %v82
    %v84 = vlaneseq
    %v85 = vshrl.u32 %v84, 7
    %v86 = vsub.s32 0, %v85
    %v87 = vrot.slane %v53, %v86
    %v88 = vlaneseq
    %v89 = vshrl.u32 %v88, 7
    %v90 = vsub.s32 0, %v89
    %v91 = vrot.slane %v54, %v90
    %v92 = vlaneseq
    %v93 = vshrl.u32 %v92, 7
    %v94 = vsub.s32 0, %v93
    %v95 = vrot.slane %v55, %v94
    %v104 = vadd.f32 %v40, %v67
    %v105 = vadd.f32 %v41, %v71
    %v106 = vadd.f32 %v42, %v75
    %v107 = vadd.f32 %v43, %v79
    %v108 = vadd.f32 %v44, %v83
    %v109 = vadd.f32 %v45, %v87
    %v110 = vadd.f32 %v46, %v91
    %v111 = vadd.f32 %v47, %v95
    %vm112 = vcmask 257024
    %113 = vst.msk [vmem:[#allocation7] sm:$0xf] %vm112, %v104
    %114 = vst.msk [vmem:[#allocation7 + $0x4] sm:$0xf] %vm112, %v105
    %115 = vst.msk [vmem:[#allocation7 + $0x8] sm:$0xf] %vm112, %v106
    %116 = vst.msk [vmem:[#allocation7 + $0xc] sm:$0xf] %vm112, %v107
    %117 = vst.msk [vmem:[#allocation7 + $0x10] sm:$0xf] %vm112, %v108
    %118 = vst.msk [vmem:[#allocation7 + $0x14] sm:$0xf] %vm112, %v109
    %119 = vst.msk [vmem:[#allocation7 + $0x18] sm:$0xf] %vm112, %v110
    %120 = vst.msk [vmem:[#allocation7 + $0x1c] sm:$0xf] %vm112, %v111
    // Predicated region
    $region18: #{tpu_custom_call.1} parent=1 // pred_check
      _
    $region19: #{tpu_custom_call.1} parent=1 // pred_check_branch
      %122 = sbr.rel (0) target = $region21
    $region20: #{tpu_custom_call.1} parent=1 // pred_region
      %s124 = ssub.s32 512, 512
      %125 = vsyncadd [#allocation4], %s124
      %s126 = sshll.u32 [#allocation7], 4
      %s127 = int_to_ptr.vmem [resolvable:$true] %s126
      %132 = dma.vmem_to_hbm [thread:$0]  %s127, 512, %s2, [#allocation4], 64, 64, 4
    $region21: #{tpu_custom_call.1} parent=1 // pred_fallthru
      _
    // Predicated region
    $region22: #{tpu_custom_call.1} parent=1 // pred_check
      _
    $region23: #{tpu_custom_call.1} parent=1 // pred_check_branch
      %134 = sbr.rel (0) target = $region25
    $region24: #{tpu_custom_call.1} parent=1 // pred_region
      %135 = dma.done [#allocation4], 512
    $region25: #{tpu_custom_call.1} parent=1 // pred_fallthru
      _
    %136 = vsyncpa [#allocation3], 1
    %137 = vsyncpa [#allocation6], 1
    %138 = vsyncpa [#allocation4], 1

</llo_original>
